<compile_context>
chip_gen: v6e
topology: v6e:2x2x1
jax: 0.10.0
libtpu: 0.0.40
codegen_flags: <defaults>
</compile_context>

<pallas_src>
import jax
import jax.numpy as jnp
from jax.experimental import pallas as pl
from jax.experimental.pallas import tpu as pltpu


# ---------------------------------------------------------------------------
# Fused kernel: SharedNetwork -> (PolicyNetwork, ValueNetwork)
# Five dense matmuls, everything stays in vregs/VMEM.
# ---------------------------------------------------------------------------
def _mlp_extractor_kernel(x_ref, we_ref, be_ref, wh1_ref, bh1_ref,
                          wp2_ref, bp2_ref, wp3_ref, bp3_ref,
                          wv2_ref, bv2_ref, pol_ref, val_ref):
    f32 = jnp.float32
    x = x_ref[...]                                            # (tb, Cin*L)

    # SharedNetwork (Conv1d+Flatten+Linear folded host-side) + ReLU
    shared = jnp.maximum(
        jnp.dot(x, we_ref[...], preferred_element_type=f32) + be_ref[...], 0.0)

    # Merged head-entry layer: lanes [0:64]=policy hidden, [64:96]=value hidden
    h1 = jnp.maximum(
        jnp.dot(shared, wh1_ref[...], preferred_element_type=f32) + bh1_ref[...],
        0.0)                                                  # (tb, 128)

    # Policy: 64 -> 32 -> pi (all weights zero-padded to 128 lanes / rows)
    hp = jnp.maximum(
        jnp.dot(h1, wp2_ref[...], preferred_element_type=f32) + bp2_ref[...],
        0.0)                                                  # (tb, 128)
    logits = jnp.dot(hp, wp3_ref[...], preferred_element_type=f32) + bp3_ref[...]
    pol_ref[...] = pl.reciprocal(1.0 + jnp.exp(-logits), approx=False)  # Sigmoid

    # Value: 32 -> vf (weight rows 64:96 nonzero, lane-padded output)
    val_ref[...] = (jnp.dot(h1, wv2_ref[...], preferred_element_type=f32)
                    + bv2_ref[...])


def _round_up(n, m):
    return ((n + m - 1) // m) * m


def mlp_extractor_forward(x_ncl, kparams, *, pi, vf, batch_tile=128):
    """MLPExtractor.forward: x (N, C, L) -> (policy (N, pi), value (N, vf))."""
    N, Cin, L = x_ncl.shape
    (w_eff, b_eff, wh1, bh1, wp2z, bp2z, wp3z, bp3z, wv2z, bv2z) = kparams
    D = w_eff.shape[0]
    assert Cin * L == D, (Cin * L, D)
    pad = wp3z.shape[1]                                       # lane-dense width

    # Flatten (N, Cin, L) -> (N, Cin*L): matches the channel-major folding of
    # W_eff done in prepare_kernel_params.  Pad rows to full sublanes / tiles.
    x_flat = x_ncl.reshape(N, D)
    tb = min(_round_up(batch_tile, 8), _round_up(N, 8))
    n_pad = _round_up(N, tb)
    if n_pad != N:
        x_flat = jnp.pad(x_flat, ((0, n_pad - N), (0, 0)))

    weights = (w_eff, b_eff, wh1, bh1, wp2z, bp2z, wp3z, bp3z, wv2z, bv2z)
    resident = lambda i: (0, 0)          # weights: same block every grid step
    w_specs = [pl.BlockSpec(w.shape, resident) for w in weights]

    pol_pad, val_pad = pl.pallas_call(
        _mlp_extractor_kernel,
        out_shape=(jax.ShapeDtypeStruct((n_pad, pad), jnp.float32),
                   jax.ShapeDtypeStruct((n_pad, pad), jnp.float32)),
        grid=(n_pad // tb,),
        in_specs=[pl.BlockSpec((tb, D), lambda i: (i, 0))] + w_specs,
        out_specs=(pl.BlockSpec((tb, pad), lambda i: (i, 0)),
                   pl.BlockSpec((tb, pad), lambda i: (i, 0))),
        compiler_params=pltpu.CompilerParams(
            dimension_semantics=("parallel",)),       # v7x: split batch on 2 TCs
    )(x_flat, *weights)
    return pol_pad[:N, :pi], val_pad[:N, :vf]


# ---------------------------------------------------------------------------
# Deterministic parameters (PyTorch layouts) + one-time kernel re-layout
# ---------------------------------------------------------------------------
def init_params(key, input_dim, mask_length, *, pi=2, vf=1, shared=128):
    """Synthetic weights in PyTorch layout/conventions (W: (out, in))."""
    lout = mask_length - 2

    def dense(k, out_f, in_f):
        k1, k2 = jax.random.split(k)
        return (0.1 * jax.random.normal(k1, (out_f, in_f), jnp.float32),
                0.1 * jax.random.normal(k2, (out_f,), jnp.float32))

    ks = jax.random.split(key, 8)
    wc = 0.1 * jax.random.normal(ks[0], (128, input_dim, 3), jnp.float32)
    bc = 0.1 * jax.random.normal(ks[1], (128,), jnp.float32)
    return {
        "conv": (wc, bc),                                  # Conv1d(Cin, 128, 3)
        "lin1": dense(ks[2], shared, 128 * lout),          # Linear(128*(L-2), 128)
        "pi": [dense(ks[3], 64, shared), dense(ks[4], 32, 64),
               dense(ks[5], pi, 32)],
        "vf": [dense(ks[6], 32, shared), dense(ks[7], vf, 32)],
    }


def prepare_kernel_params(params, *, pad_to=128):
    """Host-side, one-time re-layout of PyTorch weights for the fused kernel.

    Folds Conv1d + Flatten + Linear into a single (Cin*L, shared) weight
    (there is no nonlinearity between them), merges the policy/value entry
    layers, and zero-pads every head weight to full 128-lane matmuls.
    """
    wc, bc = params["conv"]                     # (Cout, Cin, K), (Cout,)
    cout, cin, k = wc.shape
    w1, b1 = params["lin1"]                     # (shared, Cout*Lout)
    shared_dim = w1.shape[0]
    lout = w1.shape[1] // cout
    L = lout + k - 1

    # --- Fold: lin1(flatten(conv(x))) == x_flat @ W_eff + b_eff --------------
    # PyTorch flatten of (N, Cout, Lout) is channel-major: idx = o*Lout + l.
    w1_r = w1.reshape(shared_dim, cout, lout)                       # [s, o, l]
    w_eff = jnp.zeros((cin, L, shared_dim), jnp.float32)            # [c, m, s]
    for t in range(k):
        contrib = jnp.einsum("oc,sol->cls", wc[:, :, t], w1_r)      # (c, l, s)
        w_eff = w_eff.at[:, t:t + lout, :].add(contrib)             # m = l + t
    w_eff = w_eff.reshape(cin * L, shared_dim)   # x.reshape(N, Cin*L) layout
    b_eff = b1 + jnp.einsum("o,sol->s", bc, w1_r)

    (wp1, bp1), (wp2, bp2), (wp3, bp3) = params["pi"]
    (wv1, bv1), (wv2, bv2) = params["vf"]
    d_p1, d_v1 = wp1.shape[0], wv1.shape[0]      # 64, 32
    d_p2 = wp2.shape[0]                          # 32
    pi, vf = wp3.shape[0], wv2.shape[0]
    assert d_p1 + d_v1 <= pad_to

    # --- Merged head-entry layer: h1 = [policy_h1(64) | value_h1(32) | 0] ----
    wh1 = jnp.zeros((shared_dim, pad_to), jnp.float32)
    wh1 = wh1.at[:, :d_p1].set(wp1.T)
    wh1 = wh1.at[:, d_p1:d_p1 + d_v1].set(wv1.T)
    bh1 = jnp.zeros((1, pad_to), jnp.float32)
    bh1 = bh1.at[0, :d_p1].set(bp1)
    bh1 = bh1.at[0, d_p1:d_p1 + d_v1].set(bv1)

    # --- Policy layer 2: reads h1 lanes 0:64, writes lanes 0:32 --------------
    wp2z = jnp.zeros((pad_to, pad_to), jnp.float32).at[:d_p1, :d_p2].set(wp2.T)
    bp2z = jnp.zeros((1, pad_to), jnp.float32).at[0, :d_p2].set(bp2)

    # --- Policy layer 3: reads lanes 0:32, writes lanes 0:pi -----------------
    wp3z = jnp.zeros((pad_to, pad_to), jnp.float32).at[:d_p2, :pi].set(wp3.T)
    bp3z = jnp.zeros((1, pad_to), jnp.float32).at[0, :pi].set(bp3)

    # --- Value layer 2: reads h1 lanes 64:96, writes lanes 0:vf --------------
    wv2z = jnp.zeros((pad_to, pad_to), jnp.float32)
    wv2z = wv2z.at[d_p1:d_p1 + d_v1, :vf].set(wv2.T)
    bv2z = jnp.zeros((1, pad_to), jnp.float32).at[0, :vf].set(bv2)

    return (w_eff, b_eff.reshape(1, -1), wh1, bh1,
            wp2z, bp2z, wp3z, bp3z, wv2z, bv2z)


# ---------------------------------------------------------------------------
# Pure-JAX reference mirroring the PyTorch module exactly
# ---------------------------------------------------------------------------
def _forward_ref(x_ncl, params):
    wc, bc = params["conv"]
    cout, cin, k = wc.shape
    n, _, L = x_ncl.shape
    lout = L - k + 1
    y = jnp.zeros((n, cout, lout), jnp.float32)
    for t in range(k):
        y = y + jnp.einsum("ncl,oc->nol", x_ncl[:, :, t:t + lout], wc[:, :, t])
    y = y + bc[None, :, None]
    flat = y.reshape(n, cout * lout)                      # Flatten(start_dim=1)
    w1, b1 = params["lin1"]
    shared = jax.nn.relu(flat @ w1.T + b1)
    (wp1, bp1), (wp2, bp2), (wp3, bp3) = params["pi"]
    h = jax.nn.relu(shared @ wp1.T + bp1)
    h = jax.nn.relu(h @ wp2.T + bp2)
    policy = jax.nn.sigmoid(h @ wp3.T + bp3)
    (wv1, bv1), (wv2, bv2) = params["vf"]
    v = jax.nn.relu(shared @ wv1.T + bv1)
    value = v @ wv2.T + bv2
    return policy, value


if __name__ == "__main__":
    key = jax.random.PRNGKey(0)
    N, input_dim, mask_length = 2, 8, 16      # x: (batch, channels, sequence)
    pi, vf = 2, 1

    key, kx, kp = jax.random.split(key, 3)
    x = jax.random.normal(kx, (N, input_dim, mask_length), jnp.float32)
    params = init_params(kp, input_dim, mask_length, pi=pi, vf=vf)
    kparams = prepare_kernel_params(params)

    # TODO(synk): map_function is an arbitrary user callable used only by
    # forward_actor (not by forward()); it is intentionally not in the kernel.
    policy, value = mlp_extractor_forward(x, kparams, pi=pi, vf=vf)
    policy, value = jax.block_until_ready((policy, value))

    pol_ref, val_ref = _forward_ref(x, params)
    assert policy.shape == (N, pi) and value.shape == (N, vf), \
        (policy.shape, value.shape)
    assert jnp.allclose(policy, pol_ref, rtol=1e-4, atol=1e-4), "policy mismatch"
    assert jnp.allclose(value, val_ref, rtol=1e-4, atol=1e-4), "value mismatch"

    print("KERNEL_OK")
</pallas_src>

<mosaic_0001>
module attributes {stable_mosaic.version = 11 : i64} {
  func.func @_mlp_extractor_kernel(%arg0: i32, %arg1: memref<8x128xf32, #tpu.memory_space<vmem>>, %arg2: memref<128x128xf32, #tpu.memory_space<vmem>>, %arg3: memref<1x128xf32, #tpu.memory_space<vmem>>, %arg4: memref<128x128xf32, #tpu.memory_space<vmem>>, %arg5: memref<1x128xf32, #tpu.memory_space<vmem>>, %arg6: memref<128x128xf32, #tpu.memory_space<vmem>>, %arg7: memref<1x128xf32, #tpu.memory_space<vmem>>, %arg8: memref<128x128xf32, #tpu.memory_space<vmem>>, %arg9: memref<1x128xf32, #tpu.memory_space<vmem>>, %arg10: memref<128x128xf32, #tpu.memory_space<vmem>>, %arg11: memref<1x128xf32, #tpu.memory_space<vmem>>, %arg12: memref<8x128xf32, #tpu.memory_space<vmem>>, %arg13: memref<8x128xf32, #tpu.memory_space<vmem>>) attributes {dimension_semantics = [#tpu.dimension_semantics<parallel>], iteration_bounds = array<i64: 1>, scalar_prefetch = 0 : i64, scratch_operands = 0 : i64, tpu.core_type = #tpu.core_type<tc>, window_params = [{transform_indices = @transform_0, window_bounds = array<i64: 8, 128>}, {pipeline_mode = #tpu.pipeline_mode<synchronous>, transform_indices = @transform_1, window_bounds = array<i64: 128, 128>}, {pipeline_mode = #tpu.pipeline_mode<synchronous>, transform_indices = @transform_2, window_bounds = array<i64: 1, 128>}, {pipeline_mode = #tpu.pipeline_mode<synchronous>, transform_indices = @transform_3, window_bounds = array<i64: 128, 128>}, {pipeline_mode = #tpu.pipeline_mode<synchronous>, transform_indices = @transform_4, window_bounds = array<i64: 1, 128>}, {pipeline_mode = #tpu.pipeline_mode<synchronous>, transform_indices = @transform_5, window_bounds = array<i64: 128, 128>}, {pipeline_mode = #tpu.pipeline_mode<synchronous>, transform_indices = @transform_6, window_bounds = array<i64: 1, 128>}, {pipeline_mode = #tpu.pipeline_mode<synchronous>, transform_indices = @transform_7, window_bounds = array<i64: 128, 128>}, {pipeline_mode = #tpu.pipeline_mode<synchronous>, transform_indices = @transform_8, window_bounds = array<i64: 1, 128>}, {pipeline_mode = #tpu.pipeline_mode<synchronous>, transform_indices = @transform_9, window_bounds = array<i64: 128, 128>}, {pipeline_mode = #tpu.pipeline_mode<synchronous>, transform_indices = @transform_10, window_bounds = array<i64: 1, 128>}, {transform_indices = @transform_11, window_bounds = array<i64: 8, 128>}, {transform_indices = @transform_12, window_bounds = array<i64: 8, 128>}]} {
    %c0 = arith.constant 0 : index
    %c0_0 = arith.constant 0 : index
    %0 = vector.load %arg1[%c0, %c0_0] : memref<8x128xf32, #tpu.memory_space<vmem>>, vector<8x128xf32>
    %c0_1 = arith.constant 0 : index
    %c0_2 = arith.constant 0 : index
    %1 = vector.load %arg2[%c0_1, %c0_2] : memref<128x128xf32, #tpu.memory_space<vmem>>, vector<128x128xf32>
    %cst = arith.constant dense<0.000000e+00> : vector<8x128xf32>
    %2 = tpu.matmul %0, %1, %cst {dimension_numbers = #tpu.dot_dimension_numbers<[1], [0], [0], [1], [0, 0, 1, 1], [], []>} : vector<8x128xf32>, vector<128x128xf32>, vector<8x128xf32> -> vector<8x128xf32>
    %c0_3 = arith.constant 0 : index
    %c0_4 = arith.constant 0 : index
    %3 = vector.load %arg3[%c0_3, %c0_4] : memref<1x128xf32, #tpu.memory_space<vmem>>, vector<1x128xf32>
    %4 = vector.broadcast %3 : vector<1x128xf32> to vector<8x128xf32>
    %5 = arith.addf %2, %4 : vector<8x128xf32>
    %cst_5 = arith.constant 0.000000e+00 : f32
    %6 = vector.broadcast %cst_5 : f32 to vector<8x128xf32>
    %7 = arith.maximumf %5, %6 : vector<8x128xf32>
    %c0_6 = arith.constant 0 : index
    %c0_7 = arith.constant 0 : index
    %8 = vector.load %arg4[%c0_6, %c0_7] : memref<128x128xf32, #tpu.memory_space<vmem>>, vector<128x128xf32>
    %cst_8 = arith.constant dense<0.000000e+00> : vector<8x128xf32>
    %9 = tpu.matmul %7, %8, %cst_8 {dimension_numbers = #tpu.dot_dimension_numbers<[1], [0], [0], [1], [0, 0, 1, 1], [], []>} : vector<8x128xf32>, vector<128x128xf32>, vector<8x128xf32> -> vector<8x128xf32>
    %c0_9 = arith.constant 0 : index
    %c0_10 = arith.constant 0 : index
    %10 = vector.load %arg5[%c0_9, %c0_10] : memref<1x128xf32, #tpu.memory_space<vmem>>, vector<1x128xf32>
    %11 = vector.broadcast %10 : vector<1x128xf32> to vector<8x128xf32>
    %12 = arith.addf %9, %11 : vector<8x128xf32>
    %cst_11 = arith.constant 0.000000e+00 : f32
    %13 = vector.broadcast %cst_11 : f32 to vector<8x128xf32>
    %14 = arith.maximumf %12, %13 : vector<8x128xf32>
    %c0_12 = arith.constant 0 : index
    %c0_13 = arith.constant 0 : index
    %15 = vector.load %arg6[%c0_12, %c0_13] : memref<128x128xf32, #tpu.memory_space<vmem>>, vector<128x128xf32>
    %cst_14 = arith.constant dense<0.000000e+00> : vector<8x128xf32>
    %16 = tpu.matmul %14, %15, %cst_14 {dimension_numbers = #tpu.dot_dimension_numbers<[1], [0], [0], [1], [0, 0, 1, 1], [], []>} : vector<8x128xf32>, vector<128x128xf32>, vector<8x128xf32> -> vector<8x128xf32>
    %c0_15 = arith.constant 0 : index
    %c0_16 = arith.constant 0 : index
    %17 = vector.load %arg7[%c0_15, %c0_16] : memref<1x128xf32, #tpu.memory_space<vmem>>, vector<1x128xf32>
    %18 = vector.broadcast %17 : vector<1x128xf32> to vector<8x128xf32>
    %19 = arith.addf %16, %18 : vector<8x128xf32>
    %cst_17 = arith.constant 0.000000e+00 : f32
    %20 = vector.broadcast %cst_17 : f32 to vector<8x128xf32>
    %21 = arith.maximumf %19, %20 : vector<8x128xf32>
    %c0_18 = arith.constant 0 : index
    %c0_19 = arith.constant 0 : index
    %22 = vector.load %arg8[%c0_18, %c0_19] : memref<128x128xf32, #tpu.memory_space<vmem>>, vector<128x128xf32>
    %cst_20 = arith.constant dense<0.000000e+00> : vector<8x128xf32>
    %23 = tpu.matmul %21, %22, %cst_20 {dimension_numbers = #tpu.dot_dimension_numbers<[1], [0], [0], [1], [0, 0, 1, 1], [], []>} : vector<8x128xf32>, vector<128x128xf32>, vector<8x128xf32> -> vector<8x128xf32>
    %c0_21 = arith.constant 0 : index
    %c0_22 = arith.constant 0 : index
    %24 = vector.load %arg9[%c0_21, %c0_22] : memref<1x128xf32, #tpu.memory_space<vmem>>, vector<1x128xf32>
    %25 = vector.broadcast %24 : vector<1x128xf32> to vector<8x128xf32>
    %26 = arith.addf %23, %25 : vector<8x128xf32>
    %cst_23 = arith.constant 0.000000e+00 : f32
    %27 = vector.broadcast %cst_23 : f32 to vector<8x128xf32>
    %28 = arith.subf %27, %26 : vector<8x128xf32>
    %29 = math.exp %28 : vector<8x128xf32>
    %cst_24 = arith.constant 1.000000e+00 : f32
    %30 = vector.broadcast %cst_24 : f32 to vector<8x128xf32>
    %31 = arith.addf %30, %29 : vector<8x128xf32>
    %32 = tpu.reciprocal %31 : vector<8x128xf32> -> vector<8x128xf32>
    %c0_25 = arith.constant 0 : index
    %c0_26 = arith.constant 0 : index
    %33 = vector.load %arg12[%c0_25, %c0_26] : memref<8x128xf32, #tpu.memory_space<vmem>>, vector<8x128xf32>
    tpu.vector_store %arg12[%c0_25, %c0_26], %32 {strides = array<i32>} : memref<8x128xf32, #tpu.memory_space<vmem>>, vector<8x128xf32>,
    %c0_27 = arith.constant 0 : index
    %c0_28 = arith.constant 0 : index
    %34 = vector.load %arg10[%c0_27, %c0_28] : memref<128x128xf32, #tpu.memory_space<vmem>>, vector<128x128xf32>
    %cst_29 = arith.constant dense<0.000000e+00> : vector<8x128xf32>
    %35 = tpu.matmul %14, %34, %cst_29 {dimension_numbers = #tpu.dot_dimension_numbers<[1], [0], [0], [1], [0, 0, 1, 1], [], []>} : vector<8x128xf32>, vector<128x128xf32>, vector<8x128xf32> -> vector<8x128xf32>
    %c0_30 = arith.constant 0 : index
    %c0_31 = arith.constant 0 : index
    %36 = vector.load %arg11[%c0_30, %c0_31] : memref<1x128xf32, #tpu.memory_space<vmem>>, vector<1x128xf32>
    %37 = vector.broadcast %36 : vector<1x128xf32> to vector<8x128xf32>
    %38 = arith.addf %35, %37 : vector<8x128xf32>
    %c0_32 = arith.constant 0 : index
    %c0_33 = arith.constant 0 : index
    %39 = vector.load %arg13[%c0_32, %c0_33] : memref<8x128xf32, #tpu.memory_space<vmem>>, vector<8x128xf32>
    tpu.vector_store %arg13[%c0_32, %c0_33], %38 {strides = array<i32>} : memref<8x128xf32, #tpu.memory_space<vmem>>, vector<8x128xf32>,
    return
  }
  func.func @transform_0(%arg0: i32) -> (i32, i32) {
    %c0_i32 = arith.constant 0 : i32
    %c0_i32_0 = arith.constant 0 : i32
    return %arg0, %c0_i32 : i32, i32
  }
  func.func @transform_1(%arg0: i32) -> (i32, i32) {
    %c0_i32 = arith.constant 0 : i32
    %c0_i32_0 = arith.constant 0 : i32
    %c0_i32_1 = arith.constant 0 : i32
    return %c0_i32, %c0_i32_0 : i32, i32
  }
  func.func @transform_2(%arg0: i32) -> (i32, i32) {
    %c0_i32 = arith.constant 0 : i32
    %c0_i32_0 = arith.constant 0 : i32
    %c0_i32_1 = arith.constant 0 : i32
    return %c0_i32, %c0_i32_0 : i32, i32
  }
  func.func @transform_3(%arg0: i32) -> (i32, i32) {
    %c0_i32 = arith.constant 0 : i32
    %c0_i32_0 = arith.constant 0 : i32
    %c0_i32_1 = arith.constant 0 : i32
    return %c0_i32, %c0_i32_0 : i32, i32
  }
  func.func @transform_4(%arg0: i32) -> (i32, i32) {
    %c0_i32 = arith.constant 0 : i32
    %c0_i32_0 = arith.constant 0 : i32
    %c0_i32_1 = arith.constant 0 : i32
    return %c0_i32, %c0_i32_0 : i32, i32
  }
  func.func @transform_5(%arg0: i32) -> (i32, i32) {
    %c0_i32 = arith.constant 0 : i32
    %c0_i32_0 = arith.constant 0 : i32
    %c0_i32_1 = arith.constant 0 : i32
    return %c0_i32, %c0_i32_0 : i32, i32
  }
  func.func @transform_6(%arg0: i32) -> (i32, i32) {
    %c0_i32 = arith.constant 0 : i32
    %c0_i32_0 = arith.constant 0 : i32
    %c0_i32_1 = arith.constant 0 : i32
    return %c0_i32, %c0_i32_0 : i32, i32
  }
  func.func @transform_7(%arg0: i32) -> (i32, i32) {
    %c0_i32 = arith.constant 0 : i32
    %c0_i32_0 = arith.constant 0 : i32
    %c0_i32_1 = arith.constant 0 : i32
    return %c0_i32, %c0_i32_0 : i32, i32
  }
  func.func @transform_8(%arg0: i32) -> (i32, i32) {
    %c0_i32 = arith.constant 0 : i32
    %c0_i32_0 = arith.constant 0 : i32
    %c0_i32_1 = arith.constant 0 : i32
    return %c0_i32, %c0_i32_0 : i32, i32
  }
  func.func @transform_9(%arg0: i32) -> (i32, i32) {
    %c0_i32 = arith.constant 0 : i32
    %c0_i32_0 = arith.constant 0 : i32
    %c0_i32_1 = arith.constant 0 : i32
    return %c0_i32, %c0_i32_0 : i32, i32
  }
  func.func @transform_10(%arg0: i32) -> (i32, i32) {
    %c0_i32 = arith.constant 0 : i32
    %c0_i32_0 = arith.constant 0 : i32
    %c0_i32_1 = arith.constant 0 : i32
    return %c0_i32, %c0_i32_0 : i32, i32
  }
  func.func @transform_11(%arg0: i32) -> (i32, i32) {
    %c0_i32 = arith.constant 0 : i32
    %c0_i32_0 = arith.constant 0 : i32
    return %arg0, %c0_i32 : i32, i32
  }
  func.func @transform_12(%arg0: i32) -> (i32, i32) {
    %c0_i32 = arith.constant 0 : i32
    %c0_i32_0 = arith.constant 0 : i32
    return %arg0, %c0_i32 : i32, i32
  }
}

</mosaic_0001>

<llo_original>
// kernel: tpu_custom_call.1
$region0: #{tpu_custom_call.1}
  #allocation0 [shape = 'u32[]', space=smem, size = 0x4, offset = 0x4, fixed_abs, tag = 'smem constant byte address 0x4 - core index']
  #allocation1 [shape = 'u32[144,128]{1,0:T(1,128)}', space=vmem, size = 0x12000, scoped, tag = 'internal scratch']
  %s0 = inlined_call_operand.hbm [shape: f32[8,128], index: 0, kind: input, shape index: {}]
  %s1 = inlined_call_operand.hbm [shape: f32[128,128], index: 1, kind: input, shape index: {}]
  %s2 = inlined_call_operand.vmem [shape: f32[1,128], index: 2, kind: input, shape index: {}]
  %s3 = inlined_call_operand.hbm [shape: f32[128,128], index: 3, kind: input, shape index: {}]
  %s4 = inlined_call_operand.vmem [shape: f32[1,128], index: 4, kind: input, shape index: {}]
  %s5 = inlined_call_operand.hbm [shape: f32[128,128], index: 5, kind: input, shape index: {}]
  %s6 = inlined_call_operand.vmem [shape: f32[1,128], index: 6, kind: input, shape index: {}]
  %s7 = inlined_call_operand.hbm [shape: f32[128,128], index: 7, kind: input, shape index: {}]
  %s8 = inlined_call_operand.vmem [shape: f32[1,128], index: 8, kind: input, shape index: {}]
  %s9 = inlined_call_operand.hbm [shape: f32[128,128], index: 9, kind: input, shape index: {}]
  %s10 = inlined_call_operand.vmem [shape: f32[1,128], index: 10, kind: input, shape index: {}]
  %s11 = inlined_call_operand.hbm [shape: f32[8,128], index: 11, kind: output, shape index: {0}]
  %s12 = inlined_call_operand.hbm [shape: f32[8,128], index: 12, kind: output, shape index: {1}]
  %13 = xla_tuple %s11, %s12
  %s14 = sld [smem:[#allocation0]]
  $region86: #{tpu_custom_call.1} parent=0
    _
  %s16 = ssub.s32 1, %s14
  %s17 = scalar_select 0, %s16, %s14
  $region1: #{tpu_custom_call.1} parent=0
    #allocation2 [shape = 'u8[4096]{0}', space=vmem, size = 0x1000, scoped, tag = 'input window, operand 0, single buffered']
    #allocation3 [shape = 's32[1]{0}', space=sflag, size = 0x4, scoped, tag = 'scoped memory for tpu_custom_call.1']
    #allocation4 [shape = 's32[1]{0}', space=sflag, size = 0x4, scoped, tag = 'scoped memory for tpu_custom_call.1']
    #allocation5 [shape = 'u8[65536]{0}', space=vmem, size = 0x10000, scoped, tag = 'input window, operand 1, single buffered']
    #allocation6 [shape = 's32[1]{0}', space=sflag, size = 0x4, scoped, tag = 'scoped memory for tpu_custom_call.1']
    #allocation7 [shape = 'u8[65536]{0}', space=vmem, size = 0x10000, scoped, tag = 'input window, operand 3, single buffered']
    #allocation8 [shape = 'u8[65536]{0}', space=vmem, size = 0x10000, scoped, tag = 'input window, operand 5, single buffered']
    #allocation9 [shape = 's32[1]{0}', space=sflag, size = 0x4, scoped, tag = 'scoped memory for tpu_custom_call.1']
    #allocation10 [shape = 'u8[65536]{0}', space=vmem, size = 0x10000, scoped, tag = 'input window, operand 7, single buffered']
    #allocation11 [shape = 'u8[65536]{0}', space=vmem, size = 0x10000, scoped, tag = 'input window, operand 9, single buffered']
    #allocation12 [shape = 's32[1]{0}', space=sflag, size = 0x4, scoped, tag = 'scoped memory for tpu_custom_call.1']
    #allocation13 [shape = 'u8[4096]{0}', space=vmem, size = 0x1000, scoped, tag = 'output window, operand 0, single buffered']
    #allocation14 [shape = 'u8[4096]{0}', space=vmem, size = 0x1000, scoped, tag = 'output window, operand 1, single buffered']
    #allocation15 [shape = 's32[1]{0}', space=sflag, size = 0x4, scoped, tag = 'scoped memory for tpu_custom_call.1']
    %18 = vsyncpa [#allocation3], 0
    %19 = vsyncpa [#allocation6], 0
    %20 = vsyncpa [#allocation9], 0
    %21 = vsyncpa [#allocation12], 0
    %22 = vsyncpa [#allocation4], 0
    %23 = vsyncpa [#allocation15], 0
    // Predicated region
    $region2: #{tpu_custom_call.1} parent=1 // pred_check
      _
    $region3: #{tpu_custom_call.1} parent=1 // pred_check_branch
      %25 = sbr.rel (0) target = $region5
    $region4: #{tpu_custom_call.1} parent=1 // pred_region
      %s27 = ssub.s32 128, 128
      %28 = vsyncadd [#allocation3], %s27
      %s30 = sshll.u32 [#allocation2], 4
      %s31 = int_to_ptr.vmem [resolvable:$true] %s30
      %33 = dma.hbm_to_vmem [thread:$0]  %s0, 128, %s31, [#allocation3]
    $region5: #{tpu_custom_call.1} parent=1 // pred_fallthru
      _
    // Predicated region
    $region6: #{tpu_custom_call.1} parent=1 // pred_check
      _
    $region7: #{tpu_custom_call.1} parent=1 // pred_check_branch
      %35 = sbr.rel (0) target = $region9
    $region8: #{tpu_custom_call.1} parent=1 // pred_region
      %s37 = ssub.s32 2048, 2048
      %38 = vsyncadd [#allocation6], %s37
      %s39 = sshll.u32 [#allocation5], 4
      %s40 = int_to_ptr.vmem [resolvable:$true] %s39
      %45 = dma.hbm_to_vmem [thread:$0]  %s1, 2048, %s40, [#allocation6], 128, 128, 8
    $region9: #{tpu_custom_call.1} parent=1 // pred_fallthru
      _
    // Predicated region
    $region10: #{tpu_custom_call.1} parent=1 // pred_check
      _
    $region11: #{tpu_custom_call.1} parent=1 // pred_check_branch
      %47 = sbr.rel (0) target = $region13
    $region12: #{tpu_custom_call.1} parent=1 // pred_region
      _
    $region13: #{tpu_custom_call.1} parent=1 // pred_fallthru
      _
    // Predicated region
    $region14: #{tpu_custom_call.1} parent=1 // pred_check
      _
    $region15: #{tpu_custom_call.1} parent=1 // pred_check_branch
      %49 = sbr.rel (0) target = $region17
    $region16: #{tpu_custom_call.1} parent=1 // pred_region
      %s51 = ssub.s32 2048, 2048
      %52 = vsyncadd [#allocation6], %s51
      %s53 = sshll.u32 [#allocation7], 4
      %s54 = int_to_ptr.vmem [resolvable:$true] %s53
      %59 = dma.hbm_to_vmem [thread:$0]  %s3, 2048, %s54, [#allocation6], 128, 128, 8
    $region17: #{tpu_custom_call.1} parent=1 // pred_fallthru
      _
    // Predicated region
    $region18: #{tpu_custom_call.1} parent=1 // pred_check
      _
    $region19: #{tpu_custom_call.1} parent=1 // pred_check_branch
      %61 = sbr.rel (0) target = $region21
    $region20: #{tpu_custom_call.1} parent=1 // pred_region
      _
    $region21: #{tpu_custom_call.1} parent=1 // pred_fallthru
      _
    // Predicated region
    $region22: #{tpu_custom_call.1} parent=1 // pred_check
      _
    $region23: #{tpu_custom_call.1} parent=1 // pred_check_branch
      %63 = sbr.rel (0) target = $region25
    $region24: #{tpu_custom_call.1} parent=1 // pred_region
      %s65 = ssub.s32 2048, 2048
      %66 = vsyncadd [#allocation9], %s65
      %s67 = sshll.u32 [#allocation8], 4
      %s68 = int_to_ptr.vmem [resolvable:$true] %s67
      %73 = dma.hbm_to_vmem [thread:$0]  %s5, 2048, %s68, [#allocation9], 128, 128, 8
    $region25: #{tpu_custom_call.1} parent=1 // pred_fallthru
      _
    // Predicated region
    $region26: #{tpu_custom_call.1} parent=1 // pred_check
      _
    $region27: #{tpu_custom_call.1} parent=1 // pred_check_branch
      %75 = sbr.rel (0) target = $region29
    $region28: #{tpu_custom_call.1} parent=1 // pred_region
      _
    $region29: #{tpu_custom_call.1} parent=1 // pred_fallthru
      _
    // Predicated region
    $region30: #{tpu_custom_call.1} parent=1 // pred_check
      _
    $region31: #{tpu_custom_call.1} parent=1 // pred_check_branch
      %77 = sbr.rel (0) target = $region33
    $region32: #{tpu_custom_call.1} parent=1 // pred_region
      %s79 = ssub.s32 2048, 2048
      %80 = vsyncadd [#allocation9], %s79
      %s81 = sshll.u32 [#allocation10], 4
      %s82 = int_to_ptr.vmem [resolvable:$true] %s81
      %87 = dma.hbm_to_vmem [thread:$0]  %s7, 2048, %s82, [#allocation9], 128, 128, 8
    $region33: #{tpu_custom_call.1} parent=1 // pred_fallthru
      _
    // Predicated region
    $region34: #{tpu_custom_call.1} parent=1 // pred_check
      _
    $region35: #{tpu_custom_call.1} parent=1 // pred_check_branch
      %89 = sbr.rel (0) target = $region37
    $region36: #{tpu_custom_call.1} parent=1 // pred_region
      _
    $region37: #{tpu_custom_call.1} parent=1 // pred_fallthru
      _
    // Predicated region
    $region38: #{tpu_custom_call.1} parent=1 // pred_check
      _
    $region39: #{tpu_custom_call.1} parent=1 // pred_check_branch
      %91 = sbr.rel (0) target = $region41
    $region40: #{tpu_custom_call.1} parent=1 // pred_region
      %s93 = ssub.s32 2048, 2048
      %94 = vsyncadd [#allocation12], %s93
      %s95 = sshll.u32 [#allocation11], 4
      %s96 = int_to_ptr.vmem [resolvable:$true] %s95
      %101 = dma.hbm_to_vmem [thread:$0]  %s9, 2048, %s96, [#allocation12], 128, 128, 8
    $region41: #{tpu_custom_call.1} parent=1 // pred_fallthru
      _
    // Predicated region
    $region42: #{tpu_custom_call.1} parent=1 // pred_check
      _
    $region43: #{tpu_custom_call.1} parent=1 // pred_check_branch
      %103 = sbr.rel (0) target = $region45
    $region44: #{tpu_custom_call.1} parent=1 // pred_region
      _
    $region45: #{tpu_custom_call.1} parent=1 // pred_fallthru
      _
    // Predicated region
    $region46: #{tpu_custom_call.1} parent=1 // pred_check
      _
    $region47: #{tpu_custom_call.1} parent=1 // pred_check_branch
      %105 = sbr.rel (0) target = $region49
    $region48: #{tpu_custom_call.1} parent=1 // pred_region
      %106 = dma.done [#allocation3], 128
    $region49: #{tpu_custom_call.1} parent=1 // pred_fallthru
      _
    // Predicated region
    $region50: #{tpu_custom_call.1} parent=1 // pred_check
      _
    $region51: #{tpu_custom_call.1} parent=1 // pred_check_branch
      %108 = sbr.rel (0) target = $region53
    $region52: #{tpu_custom_call.1} parent=1 // pred_region
      %109 = dma.done [#allocation6], 2048
    $region53: #{tpu_custom_call.1} parent=1 // pred_fallthru
      _
    // Predicated region
    $region54: #{tpu_custom_call.1} parent=1 // pred_check
      _
    $region55: #{tpu_custom_call.1} parent=1 // pred_check_branch
      %111 = sbr.rel (0) target = $region57
    $region56: #{tpu_custom_call.1} parent=1 // pred_region
      %112 = dma.done [#allocation6], 2048
    $region57: #{tpu_custom_call.1} parent=1 // pred_fallthru
      _
    // Predicated region
    $region58: #{tpu_custom_call.1} parent=1 // pred_check
      _
    $region59: #{tpu_custom_call.1} parent=1 // pred_check_branch
      %114 = sbr.rel (0) target = $region61
    $region60: #{tpu_custom_call.1} parent=1 // pred_region
      %115 = dma.done [#allocation9], 2048
    $region61: #{tpu_custom_call.1} parent=1 // pred_fallthru
      _
    // Predicated region
    $region62: #{tpu_custom_call.1} parent=1 // pred_check
      _
    $region63: #{tpu_custom_call.1} parent=1 // pred_check_branch
      %117 = sbr.rel (0) target = $region65
    $region64: #{tpu_custom_call.1} parent=1 // pred_region
      %118 = dma.done [#allocation9], 2048
    $region65: #{tpu_custom_call.1} parent=1 // pred_fallthru
      _
    // Predicated region
    $region66: #{tpu_custom_call.1} parent=1 // pred_check
      _
    $region67: #{tpu_custom_call.1} parent=1 // pred_check_branch
      %120 = sbr.rel (0) target = $region69
    $region68: #{tpu_custom_call.1} parent=1 // pred_region
      %121 = dma.done [#allocation12], 2048
    $region69: #{tpu_custom_call.1} parent=1 // pred_fallthru
      _
    %v122 = vld [vmem:[#allocation2] sm:$0xff]
    %v123 = vld [vmem:[#allocation5] sm:$0xff]
    %v124 = vld [vmem:[#allocation5 + $0x8] sm:$0xff]
    %v125 = vld [vmem:[#allocation5 + $0x10] sm:$0xff]
    %v126 = vld [vmem:[#allocation5 + $0x18] sm:$0xff]
    %v127 = vld [vmem:[#allocation5 + $0x20] sm:$0xff]
    %v128 = vld [vmem:[#allocation5 + $0x28] sm:$0xff]
    %v129 = vld [vmem:[#allocation5 + $0x30] sm:$0xff]
    %v130 = vld [vmem:[#allocation5 + $0x38] sm:$0xff]
    %v131 = vld [vmem:[#allocation5 + $0x40] sm:$0xff]
    %v132 = vld [vmem:[#allocation5 + $0x48] sm:$0xff]
    %v133 = vld [vmem:[#allocation5 + $0x50] sm:$0xff]
    %v134 = vld [vmem:[#allocation5 + $0x58] sm:$0xff]
    %v135 = vld [vmem:[#allocation5 + $0x60] sm:$0xff]
    %v136 = vld [vmem:[#allocation5 + $0x68] sm:$0xff]
    %v137 = vld [vmem:[#allocation5 + $0x70] sm:$0xff]
    %v138 = vld [vmem:[#allocation5 + $0x78] sm:$0xff]
    %v139 = vld [vmem:[%s2] sm:$0x1]
    %v141 = vlaneseq
    %v142 = vshrl.u32 %v141, 7
    %v143 = vsub.s32 0, %v142
    %v144 = vrot.slane %v139, %v143
    %146 = vmatprep.subr.mxu0 0.0
    %147 = vmatpush1.msra.mxu0 %v138
    %148 = vmatprep.subr.mxu0 0.0
    %149 = vmatpush1.msra.mxu0 %v137
    %150 = vmatprep.subr.mxu0 0.0
    %151 = vmatpush1.msra.mxu0 %v136
    %152 = vmatprep.subr.mxu0 0.0
    %153 = vmatpush1.msra.mxu0 %v135
    %154 = vmatprep.subr.mxu0 0.0
    %155 = vmatpush1.msra.mxu0 %v134
    %156 = vmatprep.subr.mxu0 0.0
    %157 = vmatpush1.msra.mxu0 %v133
    %158 = vmatprep.subr.mxu0 0.0
    %159 = vmatpush1.msra.mxu0 %v132
    %160 = vmatprep.subr.mxu0 0.0
    %161 = vmatpush1.msra.mxu0 %v131
    %162 = vmatprep.subr.mxu0 0.0
    %163 = vmatpush1.msra.mxu0 %v130
    %164 = vmatprep.subr.mxu0 0.0
    %165 = vmatpush1.msra.mxu0 %v129
    %166 = vmatprep.subr.mxu0 0.0
    %167 = vmatpush1.msra.mxu0 %v128
    %168 = vmatprep.subr.mxu0 0.0
    %169 = vmatpush1.msra.mxu0 %v127
    %170 = vmatprep.subr.mxu0 0.0
    %171 = vmatpush1.msra.mxu0 %v126
    %172 = vmatprep.subr.mxu0 0.0
    %173 = vmatpush1.msra.mxu0 %v125
    %174 = vmatprep.subr.mxu0 0.0
    %175 = vmatpush1.msra.mxu0 %v124
    %176 = vmatprep.subr.mxu0 0.0
    %177 = vmatpush1.msra.mxu0 %v123
    %178 = vmatprep.subr.mxu0 0.0
    %179 = vmatpush2.msra.mxu0 0.0
    %180 = vmatprep.subr.mxu0 0.0
    %181 = vmatpush2.msra.mxu0 0.0
    %182 = vmatprep.subr.mxu0 0.0
    %183 = vmatpush2.msra.mxu0 0.0
    %184 = vmatprep.subr.mxu0 0.0
    %185 = vmatpush2.msra.mxu0 0.0
    %186 = vmatprep.subr.mxu0 0.0
    %187 = vmatpush2.msra.mxu0 0.0
    %188 = vmatprep.subr.mxu0 0.0
    %189 = vmatpush2.msra.mxu0 0.0
    %190 = vmatprep.subr.mxu0 0.0
    %191 = vmatpush2.msra.mxu0 0.0
    %192 = vmatprep.subr.mxu0 0.0
    %193 = vmatpush2.msra.mxu0 0.0
    %194 = vmatprep.subr.mxu0 0.0
    %195 = vmatpush2.msra.mxu0 0.0
    %196 = vmatprep.subr.mxu0 0.0
    %197 = vmatpush2.msra.mxu0 0.0
    %198 = vmatprep.subr.mxu0 0.0
    %199 = vmatpush2.msra.mxu0 0.0
    %200 = vmatprep.subr.mxu0 0.0
    %201 = vmatpush2.msra.mxu0 0.0
    %202 = vmatprep.subr.mxu0 0.0
    %203 = vmatpush2.msra.mxu0 0.0
    %204 = vmatprep.subr.mxu0 0.0
    %205 = vmatpush2.msra.mxu0 0.0
    %206 = vmatprep.subr.mxu0 0.0
    %207 = vmatpush2.msra.mxu0 0.0
    %208 = vmatprep.subr.mxu0 0.0
    %209 = vmatpush2.msra.mxu0 0.0
    %210 = vmatprep.mubr.f32.mxu0 0.0
    %211 = vmatmul.mubr.f32.gmra.mxu0 %v122
    %v212 = vpop.f32.mrf.mxu0
    %v213 = vadd.f32 %v144, %v212
    %v214 = vpop.f32.mrf.mxu0
    %215 = vdwg.mxu0
    %v216 = vmax.f32 %v213, 0.0
    %v217 = vld [vmem:[#allocation7] sm:$0xff]
    %v218 = vld [vmem:[#allocation7 + $0x8] sm:$0xff]
    %v219 = vld [vmem:[#allocation7 + $0x10] sm:$0xff]
    %v220 = vld [vmem:[#allocation7 + $0x18] sm:$0xff]
    %v221 = vld [vmem:[#allocation7 + $0x20] sm:$0xff]
    %v222 = vld [vmem:[#allocation7 + $0x28] sm:$0xff]
    %v223 = vld [vmem:[#allocation7 + $0x30] sm:$0xff]
    %v224 = vld [vmem:[#allocation7 + $0x38] sm:$0xff]
    %v225 = vld [vmem:[#allocation7 + $0x40] sm:$0xff]
    %v226 = vld [vmem:[#allocation7 + $0x48] sm:$0xff]
    %v227 = vld [vmem:[#allocation7 + $0x50] sm:$0xff]
    %v228 = vld [vmem:[#allocation7 + $0x58] sm:$0xff]
    %v229 = vld [vmem:[#allocation7 + $0x60] sm:$0xff]
    %v230 = vld [vmem:[#allocation7 + $0x68] sm:$0xff]
    %v231 = vld [vmem:[#allocation7 + $0x70] sm:$0xff]
    %v232 = vld [vmem:[#allocation7 + $0x78] sm:$0xff]
    %v233 = vld [vmem:[%s4] sm:$0x1]
    %v235 = vlaneseq
    %v236 = vshrl.u32 %v235, 7
    %v237 = vsub.s32 0, %v236
    %v238 = vrot.slane %v233, %v237
    %240 = vmatprep.subr.mxu0 0.0
    %241 = vmatpush1.msra.mxu0 %v232
    %242 = vmatprep.subr.mxu0 0.0
    %243 = vmatpush1.msra.mxu0 %v231
    %244 = vmatprep.subr.mxu0 0.0
    %245 = vmatpush1.msra.mxu0 %v230
    %246 = vmatprep.subr.mxu0 0.0
    %247 = vmatpush1.msra.mxu0 %v229
    %248 = vmatprep.subr.mxu0 0.0
    %249 = vmatpush1.msra.mxu0 %v228
    %250 = vmatprep.subr.mxu0 0.0
    %251 = vmatpush1.msra.mxu0 %v227
    %252 = vmatprep.subr.mxu0 0.0
    %253 = vmatpush1.msra.mxu0 %v226
    %254 = vmatprep.subr.mxu0 0.0
    %255 = vmatpush1.msra.mxu0 %v225
    %256 = vmatprep.subr.mxu0 0.0
    %257 = vmatpush1.msra.mxu0 %v224
    %258 = vmatprep.subr.mxu0 0.0
    %259 = vmatpush1.msra.mxu0 %v223
    %260 = vmatprep.subr.mxu0 0.0
    %261 = vmatpush1.msra.mxu0 %v222
    %262 = vmatprep.subr.mxu0 0.0
    %263 = vmatpush1.msra.mxu0 %v221
    %264 = vmatprep.subr.mxu0 0.0
    %265 = vmatpush1.msra.mxu0 %v220
    %266 = vmatprep.subr.mxu0 0.0
    %267 = vmatpush1.msra.mxu0 %v219
    %268 = vmatprep.subr.mxu0 0.0
    %269 = vmatpush1.msra.mxu0 %v218
    %270 = vmatprep.subr.mxu0 0.0
    %271 = vmatpush1.msra.mxu0 %v217
    %272 = vmatprep.subr.mxu0 0.0
    %273 = vmatpush2.msra.mxu0 0.0
    %274 = vmatprep.subr.mxu0 0.0
    %275 = vmatpush2.msra.mxu0 0.0
    %276 = vmatprep.subr.mxu0 0.0
    %277 = vmatpush2.msra.mxu0 0.0
    %278 = vmatprep.subr.mxu0 0.0
    %279 = vmatpush2.msra.mxu0 0.0
    %280 = vmatprep.subr.mxu0 0.0
    %281 = vmatpush2.msra.mxu0 0.0
    %282 = vmatprep.subr.mxu0 0.0
    %283 = vmatpush2.msra.mxu0 0.0
    %284 = vmatprep.subr.mxu0 0.0
    %285 = vmatpush2.msra.mxu0 0.0
    %286 = vmatprep.subr.mxu0 0.0
    %287 = vmatpush2.msra.mxu0 0.0
    %288 = vmatprep.subr.mxu0 0.0
    %289 = vmatpush2.msra.mxu0 0.0
    %290 = vmatprep.subr.mxu0 0.0
    %291 = vmatpush2.msra.mxu0 0.0
    %292 = vmatprep.subr.mxu0 0.0
    %293 = vmatpush2.msra.mxu0 0.0
    %294 = vmatprep.subr.mxu0 0.0
    %295 = vmatpush2.msra.mxu0 0.0
    %296 = vmatprep.subr.mxu0 0.0
    %297 = vmatpush2.msra.mxu0 0.0
    %298 = vmatprep.subr.mxu0 0.0
    %299 = vmatpush2.msra.mxu0 0.0
    %300 = vmatprep.subr.mxu0 0.0
    %301 = vmatpush2.msra.mxu0 0.0
    %302 = vmatprep.subr.mxu0 0.0
    %303 = vmatpush2.msra.mxu0 0.0
    %304 = vmatprep.mubr.f32.mxu0 0.0
    %305 = vmatmul.mubr.f32.gmra.mxu0 %v216
    %v306 = vpop.f32.mrf.mxu0
    %v307 = vadd.f32 %v238, %v306
    %v308 = vpop.f32.mrf.mxu0
    %309 = vdwg.mxu0
    %v310 = vmax.f32 %v307, 0.0
    %v311 = vld [vmem:[#allocation8] sm:$0xff]
    %v312 = vld [vmem:[#allocation8 + $0x8] sm:$0xff]
    %v313 = vld [vmem:[#allocation8 + $0x10] sm:$0xff]
    %v314 = vld [vmem:[#allocation8 + $0x18] sm:$0xff]
    %v315 = vld [vmem:[#allocation8 + $0x20] sm:$0xff]
    %v316 = vld [vmem:[#allocation8 + $0x28] sm:$0xff]
    %v317 = vld [vmem:[#allocation8 + $0x30] sm:$0xff]
    %v318 = vld [vmem:[#allocation8 + $0x38] sm:$0xff]
    %v319 = vld [vmem:[#allocation8 + $0x40] sm:$0xff]
    %v320 = vld [vmem:[#allocation8 + $0x48] sm:$0xff]
    %v321 = vld [vmem:[#allocation8 + $0x50] sm:$0xff]
    %v322 = vld [vmem:[#allocation8 + $0x58] sm:$0xff]
    %v323 = vld [vmem:[#allocation8 + $0x60] sm:$0xff]
    %v324 = vld [vmem:[#allocation8 + $0x68] sm:$0xff]
    %v325 = vld [vmem:[#allocation8 + $0x70] sm:$0xff]
    %v326 = vld [vmem:[#allocation8 + $0x78] sm:$0xff]
    %v327 = vld [vmem:[%s6] sm:$0x1]
    %v329 = vlaneseq
    %v330 = vshrl.u32 %v329, 7
    %v331 = vsub.s32 0, %v330
    %v332 = vrot.slane %v327, %v331
    %334 = vmatprep.subr.mxu0 0.0
    %335 = vmatpush1.msra.mxu0 %v326
    %336 = vmatprep.subr.mxu0 0.0
    %337 = vmatpush1.msra.mxu0 %v325
    %338 = vmatprep.subr.mxu0 0.0
    %339 = vmatpush1.msra.mxu0 %v324
    %340 = vmatprep.subr.mxu0 0.0
    %341 = vmatpush1.msra.mxu0 %v323
    %342 = vmatprep.subr.mxu0 0.0
    %343 = vmatpush1.msra.mxu0 %v322
    %344 = vmatprep.subr.mxu0 0.0
    %345 = vmatpush1.msra.mxu0 %v321
    %346 = vmatprep.subr.mxu0 0.0
    %347 = vmatpush1.msra.mxu0 %v320
    %348 = vmatprep.subr.mxu0 0.0
    %349 = vmatpush1.msra.mxu0 %v319
    %350 = vmatprep.subr.mxu0 0.0
    %351 = vmatpush1.msra.mxu0 %v318
    %352 = vmatprep.subr.mxu0 0.0
    %353 = vmatpush1.msra.mxu0 %v317
    %354 = vmatprep.subr.mxu0 0.0
    %355 = vmatpush1.msra.mxu0 %v316
    %356 = vmatprep.subr.mxu0 0.0
    %357 = vmatpush1.msra.mxu0 %v315
    %358 = vmatprep.subr.mxu0 0.0
    %359 = vmatpush1.msra.mxu0 %v314
    %360 = vmatprep.subr.mxu0 0.0
    %361 = vmatpush1.msra.mxu0 %v313
    %362 = vmatprep.subr.mxu0 0.0
    %363 = vmatpush1.msra.mxu0 %v312
    %364 = vmatprep.subr.mxu0 0.0
    %365 = vmatpush1.msra.mxu0 %v311
    %366 = vmatprep.subr.mxu0 0.0
    %367 = vmatpush2.msra.mxu0 0.0
    %368 = vmatprep.subr.mxu0 0.0
    %369 = vmatpush2.msra.mxu0 0.0
    %370 = vmatprep.subr.mxu0 0.0
    %371 = vmatpush2.msra.mxu0 0.0
    %372 = vmatprep.subr.mxu0 0.0
    %373 = vmatpush2.msra.mxu0 0.0
    %374 = vmatprep.subr.mxu0 0.0
    %375 = vmatpush2.msra.mxu0 0.0
    %376 = vmatprep.subr.mxu0 0.0
    %377 = vmatpush2.msra.mxu0 0.0
    %378 = vmatprep.subr.mxu0 0.0
    %379 = vmatpush2.msra.mxu0 0.0
    %380 = vmatprep.subr.mxu0 0.0
    %381 = vmatpush2.msra.mxu0 0.0
    %382 = vmatprep.subr.mxu0 0.0
    %383 = vmatpush2.msra.mxu0 0.0
    %384 = vmatprep.subr.mxu0 0.0
    %385 = vmatpush2.msra.mxu0 0.0
    %386 = vmatprep.subr.mxu0 0.0
    %387 = vmatpush2.msra.mxu0 0.0
    %388 = vmatprep.subr.mxu0 0.0
    %389 = vmatpush2.msra.mxu0 0.0
    %390 = vmatprep.subr.mxu0 0.0
    %391 = vmatpush2.msra.mxu0 0.0
    %392 = vmatprep.subr.mxu0 0.0
    %393 = vmatpush2.msra.mxu0 0.0
    %394 = vmatprep.subr.mxu0 0.0
    %395 = vmatpush2.msra.mxu0 0.0
    %396 = vmatprep.subr.mxu0 0.0
    %397 = vmatpush2.msra.mxu0 0.0
    %398 = vmatprep.mubr.f32.mxu0 0.0
    %399 = vmatmul.mubr.f32.gmra.mxu0 %v310
    %v400 = vpop.f32.mrf.mxu0
    %v401 = vadd.f32 %v332, %v400
    %v402 = vpop.f32.mrf.mxu0
    %403 = vdwg.mxu0
    %v404 = vmax.f32 %v401, 0.0
    %v405 = vld [vmem:[#allocation10] sm:$0xff]
    %v406 = vld [vmem:[#allocation10 + $0x8] sm:$0xff]
    %v407 = vld [vmem:[#allocation10 + $0x10] sm:$0xff]
    %v408 = vld [vmem:[#allocation10 + $0x18] sm:$0xff]
    %v409 = vld [vmem:[#allocation10 + $0x20] sm:$0xff]
    %v410 = vld [vmem:[#allocation10 + $0x28] sm:$0xff]
    %v411 = vld [vmem:[#allocation10 + $0x30] sm:$0xff]
    %v412 = vld [vmem:[#allocation10 + $0x38] sm:$0xff]
    %v413 = vld [vmem:[#allocation10 + $0x40] sm:$0xff]
    %v414 = vld [vmem:[#allocation10 + $0x48] sm:$0xff]
    %v415 = vld [vmem:[#allocation10 + $0x50] sm:$0xff]
    %v416 = vld [vmem:[#allocation10 + $0x58] sm:$0xff]
    %v417 = vld [vmem:[#allocation10 + $0x60] sm:$0xff]
    %v418 = vld [vmem:[#allocation10 + $0x68] sm:$0xff]
    %v419 = vld [vmem:[#allocation10 + $0x70] sm:$0xff]
    %v420 = vld [vmem:[#allocation10 + $0x78] sm:$0xff]
    %v421 = vld [vmem:[%s8] sm:$0x1]
    %v423 = vlaneseq
    %v424 = vshrl.u32 %v423, 7
    %v425 = vsub.s32 0, %v424
    %v426 = vrot.slane %v421, %v425
    %428 = vmatprep.subr.mxu0 0.0
    %429 = vmatpush1.msra.mxu0 %v420
    %430 = vmatprep.subr.mxu0 0.0
    %431 = vmatpush1.msra.mxu0 %v419
    %432 = vmatprep.subr.mxu0 0.0
    %433 = vmatpush1.msra.mxu0 %v418
    %434 = vmatprep.subr.mxu0 0.0
    %435 = vmatpush1.msra.mxu0 %v417
    %436 = vmatprep.subr.mxu0 0.0
    %437 = vmatpush1.msra.mxu0 %v416
    %438 = vmatprep.subr.mxu0 0.0
    %439 = vmatpush1.msra.mxu0 %v415
    %440 = vmatprep.subr.mxu0 0.0
    %441 = vmatpush1.msra.mxu0 %v414
    %442 = vmatprep.subr.mxu0 0.0
    %443 = vmatpush1.msra.mxu0 %v413
    %444 = vmatprep.subr.mxu0 0.0
    %445 = vmatpush1.msra.mxu0 %v412
    %446 = vmatprep.subr.mxu0 0.0
    %447 = vmatpush1.msra.mxu0 %v411
    %448 = vmatprep.subr.mxu0 0.0
    %449 = vmatpush1.msra.mxu0 %v410
    %450 = vmatprep.subr.mxu0 0.0
    %451 = vmatpush1.msra.mxu0 %v409
    %452 = vmatprep.subr.mxu0 0.0
    %453 = vmatpush1.msra.mxu0 %v408
    %454 = vmatprep.subr.mxu0 0.0
    %455 = vmatpush1.msra.mxu0 %v407
    %456 = vmatprep.subr.mxu0 0.0
    %457 = vmatpush1.msra.mxu0 %v406
    %458 = vmatprep.subr.mxu0 0.0
    %459 = vmatpush1.msra.mxu0 %v405
    %460 = vmatprep.subr.mxu0 0.0
    %461 = vmatpush2.msra.mxu0 0.0
    %462 = vmatprep.subr.mxu0 0.0
    %463 = vmatpush2.msra.mxu0 0.0
    %464 = vmatprep.subr.mxu0 0.0
    %465 = vmatpush2.msra.mxu0 0.0
    %466 = vmatprep.subr.mxu0 0.0
    %467 = vmatpush2.msra.mxu0 0.0
    %468 = vmatprep.subr.mxu0 0.0
    %469 = vmatpush2.msra.mxu0 0.0
    %470 = vmatprep.subr.mxu0 0.0
    %471 = vmatpush2.msra.mxu0 0.0
    %472 = vmatprep.subr.mxu0 0.0
    %473 = vmatpush2.msra.mxu0 0.0
    %474 = vmatprep.subr.mxu0 0.0
    %475 = vmatpush2.msra.mxu0 0.0
    %476 = vmatprep.subr.mxu0 0.0
    %477 = vmatpush2.msra.mxu0 0.0
    %478 = vmatprep.subr.mxu0 0.0
    %479 = vmatpush2.msra.mxu0 0.0
    %480 = vmatprep.subr.mxu0 0.0
    %481 = vmatpush2.msra.mxu0 0.0
    %482 = vmatprep.subr.mxu0 0.0
    %483 = vmatpush2.msra.mxu0 0.0
    %484 = vmatprep.subr.mxu0 0.0
    %485 = vmatpush2.msra.mxu0 0.0
    %486 = vmatprep.subr.mxu0 0.0
    %487 = vmatpush2.msra.mxu0 0.0
    %488 = vmatprep.subr.mxu0 0.0
    %489 = vmatpush2.msra.mxu0 0.0
    %490 = vmatprep.subr.mxu0 0.0
    %491 = vmatpush2.msra.mxu0 0.0
    %492 = vmatprep.mubr.f32.mxu0 0.0
    %493 = vmatmul.mubr.f32.gmra.mxu0 %v404
    %v494 = vpop.f32.mrf.mxu0
    %v495 = vadd.f32 %v426, %v494
    %v496 = vpop.f32.mrf.mxu0
    %497 = vdwg.mxu0
    %v498 = vsub.f32 0.0, %v495
    %v499 = vmul.f32 %v498, 1.442695
    %v500 = vpow.pop %v499
    %v501 = vadd.f32 %v500, 1.0
    %v502 = vrcp.pop %v501
    %503 = vst [vmem:[#allocation13] sm:$0xff] %v502
    %v504 = vld [vmem:[#allocation11] sm:$0xff]
    %v505 = vld [vmem:[#allocation11 + $0x8] sm:$0xff]
    %v506 = vld [vmem:[#allocation11 + $0x10] sm:$0xff]
    %v507 = vld [vmem:[#allocation11 + $0x18] sm:$0xff]
    %v508 = vld [vmem:[#allocation11 + $0x20] sm:$0xff]
    %v509 = vld [vmem:[#allocation11 + $0x28] sm:$0xff]
    %v510 = vld [vmem:[#allocation11 + $0x30] sm:$0xff]
    %v511 = vld [vmem:[#allocation11 + $0x38] sm:$0xff]
    %v512 = vld [vmem:[#allocation11 + $0x40] sm:$0xff]
    %v513 = vld [vmem:[#allocation11 + $0x48] sm:$0xff]
    %v514 = vld [vmem:[#allocation11 + $0x50] sm:$0xff]
    %v515 = vld [vmem:[#allocation11 + $0x58] sm:$0xff]
    %v516 = vld [vmem:[#allocation11 + $0x60] sm:$0xff]
    %v517 = vld [vmem:[#allocation11 + $0x68] sm:$0xff]
    %v518 = vld [vmem:[#allocation11 + $0x70] sm:$0xff]
    %v519 = vld [vmem:[#allocation11 + $0x78] sm:$0xff]
    %v520 = vld [vmem:[%s10] sm:$0x1]
    %v522 = vlaneseq
    %v523 = vshrl.u32 %v522, 7
    %v524 = vsub.s32 0, %v523
    %v525 = vrot.slane %v520, %v524
    %527 = vmatprep.subr.mxu0 0.0
    %528 = vmatpush1.msra.mxu0 %v519
    %529 = vmatprep.subr.mxu0 0.0
    %530 = vmatpush1.msra.mxu0 %v518
    %531 = vmatprep.subr.mxu0 0.0
    %532 = vmatpush1.msra.mxu0 %v517
    %533 = vmatprep.subr.mxu0 0.0
    %534 = vmatpush1.msra.mxu0 %v516
    %535 = vmatprep.subr.mxu0 0.0
    %536 = vmatpush1.msra.mxu0 %v515
    %537 = vmatprep.subr.mxu0 0.0
    %538 = vmatpush1.msra.mxu0 %v514
    %539 = vmatprep.subr.mxu0 0.0
    %540 = vmatpush1.msra.mxu0 %v513
    %541 = vmatprep.subr.mxu0 0.0
    %542 = vmatpush1.msra.mxu0 %v512
    %543 = vmatprep.subr.mxu0 0.0
    %544 = vmatpush1.msra.mxu0 %v511
    %545 = vmatprep.subr.mxu0 0.0
    %546 = vmatpush1.msra.mxu0 %v510
    %547 = vmatprep.subr.mxu0 0.0
    %548 = vmatpush1.msra.mxu0 %v509
    %549 = vmatprep.subr.mxu0 0.0
    %550 = vmatpush1.msra.mxu0 %v508
    %551 = vmatprep.subr.mxu0 0.0
    %552 = vmatpush1.msra.mxu0 %v507
    %553 = vmatprep.subr.mxu0 0.0
    %554 = vmatpush1.msra.mxu0 %v506
    %555 = vmatprep.subr.mxu0 0.0
    %556 = vmatpush1.msra.mxu0 %v505
    %557 = vmatprep.subr.mxu0 0.0
    %558 = vmatpush1.msra.mxu0 %v504
    %559 = vmatprep.subr.mxu0 0.0
    %560 = vmatpush2.msra.mxu0 0.0
    %561 = vmatprep.subr.mxu0 0.0
    %562 = vmatpush2.msra.mxu0 0.0
    %563 = vmatprep.subr.mxu0 0.0
    %564 = vmatpush2.msra.mxu0 0.0
    %565 = vmatprep.subr.mxu0 0.0
    %566 = vmatpush2.msra.mxu0 0.0
    %567 = vmatprep.subr.mxu0 0.0
    %568 = vmatpush2.msra.mxu0 0.0
    %569 = vmatprep.subr.mxu0 0.0
    %570 = vmatpush2.msra.mxu0 0.0
    %571 = vmatprep.subr.mxu0 0.0
    %572 = vmatpush2.msra.mxu0 0.0
    %573 = vmatprep.subr.mxu0 0.0
    %574 = vmatpush2.msra.mxu0 0.0
    %575 = vmatprep.subr.mxu0 0.0
    %576 = vmatpush2.msra.mxu0 0.0
    %577 = vmatprep.subr.mxu0 0.0
    %578 = vmatpush2.msra.mxu0 0.0
    %579 = vmatprep.subr.mxu0 0.0
    %580 = vmatpush2.msra.mxu0 0.0
    %581 = vmatprep.subr.mxu0 0.0
    %582 = vmatpush2.msra.mxu0 0.0
    %583 = vmatprep.subr.mxu0 0.0
    %584 = vmatpush2.msra.mxu0 0.0
    %585 = vmatprep.subr.mxu0 0.0
    %586 = vmatpush2.msra.mxu0 0.0
    %587 = vmatprep.subr.mxu0 0.0
    %588 = vmatpush2.msra.mxu0 0.0
    %589 = vmatprep.subr.mxu0 0.0
    %590 = vmatpush2.msra.mxu0 0.0
    %591 = vmatprep.mubr.f32.mxu0 0.0
    %592 = vmatmul.mubr.f32.gmra.mxu0 %v310
    %v593 = vpop.f32.mrf.mxu0
    %v594 = vadd.f32 %v525, %v593
    %v595 = vpop.f32.mrf.mxu0
    %596 = vdwg.mxu0
    %597 = vst [vmem:[#allocation14] sm:$0xff] %v594
    // Predicated region
    $region70: #{tpu_custom_call.1} parent=1 // pred_check
      _
    $region71: #{tpu_custom_call.1} parent=1 // pred_check_branch
      %599 = sbr.rel (0) target = $region73
    $region72: #{tpu_custom_call.1} parent=1 // pred_region
      %s601 = ssub.s32 128, 128
      %602 = vsyncadd [#allocation4], %s601
      %s604 = sshll.u32 [#allocation13], 4
      %s605 = int_to_ptr.vmem [resolvable:$true] %s604
      %607 = dma.vmem_to_hbm [thread:$0]  %s605, 128, %s11, [#allocation4]
    $region73: #{tpu_custom_call.1} parent=1 // pred_fallthru
      _
    // Predicated region
    $region74: #{tpu_custom_call.1} parent=1 // pred_check
      _
    $region75: #{tpu_custom_call.1} parent=1 // pred_check_branch
      %609 = sbr.rel (0) target = $region77
    $region76: #{tpu_custom_call.1} parent=1 // pred_region
      %s611 = ssub.s32 128, 128
      %612 = vsyncadd [#allocation15], %s611
      %s614 = sshll.u32 [#allocation14], 4
      %s615 = int_to_ptr.vmem [resolvable:$true] %s614
      %617 = dma.vmem_to_hbm [thread:$0]  %s615, 128, %s12, [#allocation15]
    $region77: #{tpu_custom_call.1} parent=1 // pred_fallthru
      _
    // Predicated region
    $region78: #{tpu_custom_call.1} parent=1 // pred_check
      _
    $region79: #{tpu_custom_call.1} parent=1 // pred_check_branch
      %619 = sbr.rel (0) target = $region81
    $region80: #{tpu_custom_call.1} parent=1 // pred_region
      %620 = dma.done [#allocation4], 128
    $region81: #{tpu_custom_call.1} parent=1 // pred_fallthru
      _
    // Predicated region
    $region82: #{tpu_custom_call.1} parent=1 // pred_check
      _
    $region83: #{tpu_custom_call.1} parent=1 // pred_check_branch
      %622 = sbr.rel (0) target = $region85
    $region84: #{tpu_custom_call.1} parent=1 // pred_region
      %623 = dma.done [#allocation15], 128
    $region85: #{tpu_custom_call.1} parent=1 // pred_fallthru
      _
    %624 = vsyncpa [#allocation3], 1
    %625 = vsyncpa [#allocation6], 1
    %626 = vsyncpa [#allocation9], 1
    %627 = vsyncpa [#allocation12], 1
    %628 = vsyncpa [#allocation4], 1
    %629 = vsyncpa [#allocation15], 1

</llo_original>
